<compile_context>
chip_gen: v6e
topology: v6e:2x2x1
jax: 0.10.0
libtpu: 0.0.40
codegen_flags: <defaults>
</compile_context>

<pallas_src>
import jax
import jax.numpy as jnp
from jax.experimental import pallas as pl
from jax.experimental.pallas import tpu as pltpu

LANE = 128


def _round_up(n, m):
    return ((n + m - 1) // m) * m


def titlenet_kernel(x_ref,
                    w1_ref, b1_ref,
                    w2_ref, b2_ref,
                    w3_ref, b3_ref,
                    w4_ref, b4_ref,
                    o_ref):
    # fcm1: Dropout (identity in eval) -> Linear -> ReLU
    h = jnp.dot(x_ref[...], w1_ref[...], preferred_element_type=jnp.float32)
    h = jnp.maximum(h + b1_ref[...], 0.0).astype(w2_ref.dtype)
    # fcm2
    h = jnp.dot(h, w2_ref[...], preferred_element_type=jnp.float32)
    h = jnp.maximum(h + b2_ref[...], 0.0).astype(w3_ref.dtype)
    # fcm3
    h = jnp.dot(h, w3_ref[...], preferred_element_type=jnp.float32)
    h = jnp.maximum(h + b3_ref[...], 0.0).astype(w4_ref.dtype)
    # fcm4: plain Linear (no ReLU), f32 output
    h = jnp.dot(h, w4_ref[...], preferred_element_type=jnp.float32)
    o_ref[...] = (h + b4_ref[...]).astype(o_ref.dtype)


def titlenet_forward(x, params, *, batch_tile=256, param_dtype=jnp.bfloat16):
    """x: (B, input_size) f32. params: list of 4 (W (in,out), b (1,out)) f32 arrays.

    Returns (B, num_classes) f32 logits.
    """
    B, in_f = x.shape
    num_classes = params[-1][0].shape[1]

    # --- pad feature dims to multiples of 128 (lane-dense), weights -> bf16 ---
    in_pad = _round_up(in_f, LANE)
    padded_flat = []
    prev_pad = in_pad
    for w, b in params:
        i, o = w.shape
        o_pad = _round_up(o, LANE)
        w_p = jnp.zeros((prev_pad, o_pad), param_dtype).at[:i, :o].set(
            w.astype(param_dtype))
        b_p = jnp.zeros((1, o_pad), jnp.float32).at[:, :o].set(
            jnp.reshape(b, (1, o)).astype(jnp.float32))
        padded_flat.extend([w_p, b_p])
        prev_pad = o_pad
    out_pad = prev_pad

    # --- pad batch to a multiple of the batch tile, cast x to bf16 ---
    tb = max(8, min(batch_tile, _round_up(B, 8)))
    b_pad = _round_up(B, tb)
    x_p = jnp.zeros((b_pad, in_pad), param_dtype).at[:B, :in_f].set(
        x.astype(param_dtype))

    grid = (pl.cdiv(b_pad, tb),)

    x_spec = pl.BlockSpec((tb, in_pad), lambda i: (i, 0))
    # Weights/biases: constant index_map -> VMEM-resident, no re-DMA per step.
    param_specs = [pl.BlockSpec(p.shape, lambda i: (0, 0)) for p in padded_flat]
    out_spec = pl.BlockSpec((tb, out_pad), lambda i: (i, 0))

    flops = 2 * b_pad * (in_pad * 512 + 512 * 128 + 128 * 128 + 128 * 128)
    bytes_accessed = (x_p.size * x_p.dtype.itemsize
                      + sum(p.size * p.dtype.itemsize for p in padded_flat)
                      + b_pad * out_pad * 4)

    out = pl.pallas_call(
        titlenet_kernel,
        out_shape=jax.ShapeDtypeStruct((b_pad, out_pad), jnp.float32),
        grid=grid,
        in_specs=[x_spec] + param_specs,
        out_specs=out_spec,
        compiler_params=pltpu.CompilerParams(
            dimension_semantics=("parallel",)),
        cost_estimate=pl.CostEstimate(
            flops=flops, transcendentals=0, bytes_accessed=bytes_accessed),
    )(x_p, *padded_flat)

    return out[:B, :num_classes]


def init_linear(key, in_f, out_f):
    # Mimic PyTorch nn.Linear default init: U(-1/sqrt(in_f), 1/sqrt(in_f)).
    # Weight stored pre-transposed as (in_f, out_f).
    kw, kb = jax.random.split(key)
    bound = 1.0 / jnp.sqrt(jnp.float32(in_f))
    w = jax.random.uniform(kw, (in_f, out_f), jnp.float32, -bound, bound)
    b = jax.random.uniform(kb, (1, out_f), jnp.float32, -bound, bound)
    return w, b


def reference_forward(x, params, param_dtype=jnp.bfloat16):
    # f32 math using the same bf16-quantized weights the kernel sees
    # (so the comparison only measures activation-precision differences).
    h = x.astype(jnp.float32)
    for i, (w, b) in enumerate(params):
        w_q = w.astype(param_dtype).astype(jnp.float32)
        h = h @ w_q + jnp.reshape(b, (1, -1)).astype(jnp.float32)
        if i < len(params) - 1:
            h = jnp.maximum(h, 0.0)
    return h


if __name__ == "__main__":
    input_size = 32
    num_classes = 10
    batch = 8

    key = jax.random.PRNGKey(0)
    kx, k1, k2, k3, k4 = jax.random.split(key, 5)

    x = jax.random.normal(kx, (batch, input_size), jnp.float32)

    dims = [(input_size, 400), (400, 120), (120, 60), (60, num_classes)]
    params = [init_linear(k, i, o) for k, (i, o) in zip([k1, k2, k3, k4], dims)]

    out = titlenet_forward(x, params)
    out = jax.block_until_ready(out)

    ref = reference_forward(x, params)
    assert out.shape == (batch, num_classes)
    assert jnp.allclose(out, ref, atol=2e-2, rtol=2e-2), (
        float(jnp.max(jnp.abs(out - ref))))

    print("KERNEL_OK")
</pallas_src>

<mosaic_0001>
module attributes {stable_mosaic.version = 11 : i64} {
  func.func @titlenet_kernel(%arg0: i32, %arg1: memref<8x128xbf16, #tpu.memory_space<vmem>>, %arg2: memref<128x512xbf16, #tpu.memory_space<vmem>>, %arg3: memref<1x512xf32, #tpu.memory_space<vmem>>, %arg4: memref<512x128xbf16, #tpu.memory_space<vmem>>, %arg5: memref<1x128xf32, #tpu.memory_space<vmem>>, %arg6: memref<128x128xbf16, #tpu.memory_space<vmem>>, %arg7: memref<1x128xf32, #tpu.memory_space<vmem>>, %arg8: memref<128x128xbf16, #tpu.memory_space<vmem>>, %arg9: memref<1x128xf32, #tpu.memory_space<vmem>>, %arg10: memref<8x128xf32, #tpu.memory_space<vmem>>) attributes {dimension_semantics = [#tpu.dimension_semantics<parallel>], iteration_bounds = array<i64: 1>, scalar_prefetch = 0 : i64, scratch_operands = 0 : i64, tpu.core_type = #tpu.core_type<tc>, window_params = [{transform_indices = @transform_0, window_bounds = array<i64: 8, 128>}, {pipeline_mode = #tpu.pipeline_mode<synchronous>, transform_indices = @transform_1, window_bounds = array<i64: 128, 512>}, {pipeline_mode = #tpu.pipeline_mode<synchronous>, transform_indices = @transform_2, window_bounds = array<i64: 1, 512>}, {pipeline_mode = #tpu.pipeline_mode<synchronous>, transform_indices = @transform_3, window_bounds = array<i64: 512, 128>}, {pipeline_mode = #tpu.pipeline_mode<synchronous>, transform_indices = @transform_4, window_bounds = array<i64: 1, 128>}, {pipeline_mode = #tpu.pipeline_mode<synchronous>, transform_indices = @transform_5, window_bounds = array<i64: 128, 128>}, {pipeline_mode = #tpu.pipeline_mode<synchronous>, transform_indices = @transform_6, window_bounds = array<i64: 1, 128>}, {pipeline_mode = #tpu.pipeline_mode<synchronous>, transform_indices = @transform_7, window_bounds = array<i64: 128, 128>}, {pipeline_mode = #tpu.pipeline_mode<synchronous>, transform_indices = @transform_8, window_bounds = array<i64: 1, 128>}, {transform_indices = @transform_9, window_bounds = array<i64: 8, 128>}]} {
    %c0 = arith.constant 0 : index
    %c0_0 = arith.constant 0 : index
    %0 = vector.load %arg1[%c0, %c0_0] : memref<8x128xbf16, #tpu.memory_space<vmem>>, vector<8x128xbf16>
    %c0_1 = arith.constant 0 : index
    %c0_2 = arith.constant 0 : index
    %1 = vector.load %arg2[%c0_1, %c0_2] : memref<128x512xbf16, #tpu.memory_space<vmem>>, vector<128x512xbf16>
    %cst = arith.constant dense<0.000000e+00> : vector<8x512xf32>
    %2 = tpu.matmul %0, %1, %cst {dimension_numbers = #tpu.dot_dimension_numbers<[1], [0], [0], [1], [0, 0, 1, 1], [], []>} : vector<8x128xbf16>, vector<128x512xbf16>, vector<8x512xf32> -> vector<8x512xf32>
    %c0_3 = arith.constant 0 : index
    %c0_4 = arith.constant 0 : index
    %3 = vector.load %arg3[%c0_3, %c0_4] : memref<1x512xf32, #tpu.memory_space<vmem>>, vector<1x512xf32>
    %4 = vector.broadcast %3 : vector<1x512xf32> to vector<8x512xf32>
    %5 = arith.addf %2, %4 : vector<8x512xf32>
    %cst_5 = arith.constant 0.000000e+00 : f32
    %6 = vector.broadcast %cst_5 : f32 to vector<8x512xf32>
    %7 = arith.maximumf %5, %6 : vector<8x512xf32>
    %8 = arith.truncf %7 : vector<8x512xf32> to vector<8x512xbf16>
    %c0_6 = arith.constant 0 : index
    %c0_7 = arith.constant 0 : index
    %9 = vector.load %arg4[%c0_6, %c0_7] : memref<512x128xbf16, #tpu.memory_space<vmem>>, vector<512x128xbf16>
    %cst_8 = arith.constant dense<0.000000e+00> : vector<8x128xf32>
    %10 = tpu.matmul %8, %9, %cst_8 {dimension_numbers = #tpu.dot_dimension_numbers<[1], [0], [0], [1], [0, 0, 1, 1], [], []>} : vector<8x512xbf16>, vector<512x128xbf16>, vector<8x128xf32> -> vector<8x128xf32>
    %c0_9 = arith.constant 0 : index
    %c0_10 = arith.constant 0 : index
    %11 = vector.load %arg5[%c0_9, %c0_10] : memref<1x128xf32, #tpu.memory_space<vmem>>, vector<1x128xf32>
    %12 = vector.broadcast %11 : vector<1x128xf32> to vector<8x128xf32>
    %13 = arith.addf %10, %12 : vector<8x128xf32>
    %cst_11 = arith.constant 0.000000e+00 : f32
    %14 = vector.broadcast %cst_11 : f32 to vector<8x128xf32>
    %15 = arith.maximumf %13, %14 : vector<8x128xf32>
    %16 = arith.truncf %15 : vector<8x128xf32> to vector<8x128xbf16>
    %c0_12 = arith.constant 0 : index
    %c0_13 = arith.constant 0 : index
    %17 = vector.load %arg6[%c0_12, %c0_13] : memref<128x128xbf16, #tpu.memory_space<vmem>>, vector<128x128xbf16>
    %cst_14 = arith.constant dense<0.000000e+00> : vector<8x128xf32>
    %18 = tpu.matmul %16, %17, %cst_14 {dimension_numbers = #tpu.dot_dimension_numbers<[1], [0], [0], [1], [0, 0, 1, 1], [], []>} : vector<8x128xbf16>, vector<128x128xbf16>, vector<8x128xf32> -> vector<8x128xf32>
    %c0_15 = arith.constant 0 : index
    %c0_16 = arith.constant 0 : index
    %19 = vector.load %arg7[%c0_15, %c0_16] : memref<1x128xf32, #tpu.memory_space<vmem>>, vector<1x128xf32>
    %20 = vector.broadcast %19 : vector<1x128xf32> to vector<8x128xf32>
    %21 = arith.addf %18, %20 : vector<8x128xf32>
    %cst_17 = arith.constant 0.000000e+00 : f32
    %22 = vector.broadcast %cst_17 : f32 to vector<8x128xf32>
    %23 = arith.maximumf %21, %22 : vector<8x128xf32>
    %24 = arith.truncf %23 : vector<8x128xf32> to vector<8x128xbf16>
    %c0_18 = arith.constant 0 : index
    %c0_19 = arith.constant 0 : index
    %25 = vector.load %arg8[%c0_18, %c0_19] : memref<128x128xbf16, #tpu.memory_space<vmem>>, vector<128x128xbf16>
    %cst_20 = arith.constant dense<0.000000e+00> : vector<8x128xf32>
    %26 = tpu.matmul %24, %25, %cst_20 {dimension_numbers = #tpu.dot_dimension_numbers<[1], [0], [0], [1], [0, 0, 1, 1], [], []>} : vector<8x128xbf16>, vector<128x128xbf16>, vector<8x128xf32> -> vector<8x128xf32>
    %c0_21 = arith.constant 0 : index
    %c0_22 = arith.constant 0 : index
    %27 = vector.load %arg9[%c0_21, %c0_22] : memref<1x128xf32, #tpu.memory_space<vmem>>, vector<1x128xf32>
    %28 = vector.broadcast %27 : vector<1x128xf32> to vector<8x128xf32>
    %29 = arith.addf %26, %28 : vector<8x128xf32>
    %c0_23 = arith.constant 0 : index
    %c0_24 = arith.constant 0 : index
    %30 = vector.load %arg10[%c0_23, %c0_24] : memref<8x128xf32, #tpu.memory_space<vmem>>, vector<8x128xf32>
    tpu.vector_store %arg10[%c0_23, %c0_24], %29 {strides = array<i32>} : memref<8x128xf32, #tpu.memory_space<vmem>>, vector<8x128xf32>,
    return
  }
  func.func @transform_0(%arg0: i32) -> (i32, i32) {
    %c0_i32 = arith.constant 0 : i32
    %c0_i32_0 = arith.constant 0 : i32
    return %arg0, %c0_i32 : i32, i32
  }
  func.func @transform_1(%arg0: i32) -> (i32, i32) {
    %c0_i32 = arith.constant 0 : i32
    %c0_i32_0 = arith.constant 0 : i32
    %c0_i32_1 = arith.constant 0 : i32
    return %c0_i32, %c0_i32_0 : i32, i32
  }
  func.func @transform_2(%arg0: i32) -> (i32, i32) {
    %c0_i32 = arith.constant 0 : i32
    %c0_i32_0 = arith.constant 0 : i32
    %c0_i32_1 = arith.constant 0 : i32
    return %c0_i32, %c0_i32_0 : i32, i32
  }
  func.func @transform_3(%arg0: i32) -> (i32, i32) {
    %c0_i32 = arith.constant 0 : i32
    %c0_i32_0 = arith.constant 0 : i32
    %c0_i32_1 = arith.constant 0 : i32
    return %c0_i32, %c0_i32_0 : i32, i32
  }
  func.func @transform_4(%arg0: i32) -> (i32, i32) {
    %c0_i32 = arith.constant 0 : i32
    %c0_i32_0 = arith.constant 0 : i32
    %c0_i32_1 = arith.constant 0 : i32
    return %c0_i32, %c0_i32_0 : i32, i32
  }
  func.func @transform_5(%arg0: i32) -> (i32, i32) {
    %c0_i32 = arith.constant 0 : i32
    %c0_i32_0 = arith.constant 0 : i32
    %c0_i32_1 = arith.constant 0 : i32
    return %c0_i32, %c0_i32_0 : i32, i32
  }
  func.func @transform_6(%arg0: i32) -> (i32, i32) {
    %c0_i32 = arith.constant 0 : i32
    %c0_i32_0 = arith.constant 0 : i32
    %c0_i32_1 = arith.constant 0 : i32
    return %c0_i32, %c0_i32_0 : i32, i32
  }
  func.func @transform_7(%arg0: i32) -> (i32, i32) {
    %c0_i32 = arith.constant 0 : i32
    %c0_i32_0 = arith.constant 0 : i32
    %c0_i32_1 = arith.constant 0 : i32
    return %c0_i32, %c0_i32_0 : i32, i32
  }
  func.func @transform_8(%arg0: i32) -> (i32, i32) {
    %c0_i32 = arith.constant 0 : i32
    %c0_i32_0 = arith.constant 0 : i32
    %c0_i32_1 = arith.constant 0 : i32
    return %c0_i32, %c0_i32_0 : i32, i32
  }
  func.func @transform_9(%arg0: i32) -> (i32, i32) {
    %c0_i32 = arith.constant 0 : i32
    %c0_i32_0 = arith.constant 0 : i32
    return %arg0, %c0_i32 : i32, i32
  }
}

</mosaic_0001>

<llo_original>
// kernel: tpu_custom_call.1
$region0: #{tpu_custom_call.1}
  #allocation0 [shape = 'u32[]', space=smem, size = 0x4, offset = 0x4, fixed_abs, tag = 'smem constant byte address 0x4 - core index']
  #allocation1 [shape = 'u32[144,128]{1,0:T(1,128)}', space=vmem, size = 0x12000, scoped, tag = 'internal scratch']
  %s0 = inlined_call_operand.hbm [shape: bf16[8,128], index: 0, kind: input, shape index: {}]
  %s1 = inlined_call_operand.hbm [shape: bf16[128,512], index: 1, kind: input, shape index: {}]
  %s2 = inlined_call_operand.hbm [shape: f32[1,512], index: 2, kind: input, shape index: {}]
  %s3 = inlined_call_operand.hbm [shape: bf16[512,128], index: 3, kind: input, shape index: {}]
  %s4 = inlined_call_operand.vmem [shape: f32[1,128], index: 4, kind: input, shape index: {}]
  %s5 = inlined_call_operand.hbm [shape: bf16[128,128], index: 5, kind: input, shape index: {}]
  %s6 = inlined_call_operand.vmem [shape: f32[1,128], index: 6, kind: input, shape index: {}]
  %s7 = inlined_call_operand.hbm [shape: bf16[128,128], index: 7, kind: input, shape index: {}]
  %s8 = inlined_call_operand.vmem [shape: f32[1,128], index: 8, kind: input, shape index: {}]
  %s9 = inlined_call_operand.hbm [shape: f32[8,128], index: 9, kind: output, shape index: {}]
  %s10 = sld [smem:[#allocation0]]
  $region70: #{tpu_custom_call.1} parent=0
    _
  %s12 = ssub.s32 1, %s10
  %s13 = scalar_select 0, %s12, %s10
  $region1: #{tpu_custom_call.1} parent=0
    #allocation2 [shape = 'u8[2048]{0}', space=vmem, size = 0x800, scoped, tag = 'input window, operand 0, single buffered']
    #allocation3 [shape = 's32[1]{0}', space=sflag, size = 0x4, scoped, tag = 'scoped memory for tpu_custom_call.1']
    #allocation4 [shape = 's32[1]{0}', space=sflag, size = 0x4, scoped, tag = 'scoped memory for tpu_custom_call.1']
    #allocation5 [shape = 'u8[131072]{0}', space=vmem, size = 0x20000, scoped, tag = 'input window, operand 1, single buffered']
    #allocation6 [shape = 's32[1]{0}', space=sflag, size = 0x4, scoped, tag = 'scoped memory for tpu_custom_call.1']
    #allocation7 [shape = 'u8[2048]{0}', space=vmem, size = 0x800, scoped, tag = 'input window, operand 2, single buffered']
    #allocation8 [shape = 'u8[131072]{0}', space=vmem, size = 0x20000, scoped, tag = 'input window, operand 3, single buffered']
    #allocation9 [shape = 's32[1]{0}', space=sflag, size = 0x4, scoped, tag = 'scoped memory for tpu_custom_call.1']
    #allocation10 [shape = 'u8[32768]{0}', space=vmem, size = 0x8000, scoped, tag = 'input window, operand 5, single buffered']
    #allocation11 [shape = 'u8[32768]{0}', space=vmem, size = 0x8000, scoped, tag = 'input window, operand 7, single buffered']
    #allocation12 [shape = 's32[1]{0}', space=sflag, size = 0x4, scoped, tag = 'scoped memory for tpu_custom_call.1']
    #allocation13 [shape = 'u8[4096]{0}', space=vmem, size = 0x1000, scoped, tag = 'output window, operand 0, single buffered']
    %14 = vsyncpa [#allocation3], 0
    %15 = vsyncpa [#allocation6], 0
    %16 = vsyncpa [#allocation9], 0
    %17 = vsyncpa [#allocation12], 0
    %18 = vsyncpa [#allocation4], 0
    // Predicated region
    $region2: #{tpu_custom_call.1} parent=1 // pred_check
      _
    $region3: #{tpu_custom_call.1} parent=1 // pred_check_branch
      %20 = sbr.rel (0) target = $region5
    $region4: #{tpu_custom_call.1} parent=1 // pred_region
      %s22 = ssub.s32 64, 64
      %23 = vsyncadd [#allocation3], %s22
      %s25 = sshll.u32 [#allocation2], 4
      %s26 = int_to_ptr.vmem [resolvable:$true] %s25
      %28 = dma.hbm_to_vmem [thread:$0]  %s0, 64, %s26, [#allocation3]
    $region5: #{tpu_custom_call.1} parent=1 // pred_fallthru
      _
    // Predicated region
    $region6: #{tpu_custom_call.1} parent=1 // pred_check
      _
    $region7: #{tpu_custom_call.1} parent=1 // pred_check_branch
      %30 = sbr.rel (0) target = $region9
    $region8: #{tpu_custom_call.1} parent=1 // pred_region
      %s32 = ssub.s32 4096, 4096
      %33 = vsyncadd [#allocation6], %s32
      %s34 = sshll.u32 [#allocation5], 4
      %s35 = int_to_ptr.vmem [resolvable:$true] %s34
      %40 = dma.hbm_to_vmem [thread:$0]  %s1, 4096, %s35, [#allocation6], 256, 256, 16
    $region9: #{tpu_custom_call.1} parent=1 // pred_fallthru
      _
    // Predicated region
    $region10: #{tpu_custom_call.1} parent=1 // pred_check
      _
    $region11: #{tpu_custom_call.1} parent=1 // pred_check_branch
      %42 = sbr.rel (0) target = $region13
    $region12: #{tpu_custom_call.1} parent=1 // pred_region
      %s44 = ssub.s32 64, 64
      %45 = vsyncadd [#allocation6], %s44
      %s47 = sshll.u32 [#allocation7], 4
      %s48 = int_to_ptr.vmem [resolvable:$true] %s47
      %50 = dma.hbm_to_vmem [thread:$0]  %s2, 64, %s48, [#allocation6]
    $region13: #{tpu_custom_call.1} parent=1 // pred_fallthru
      _
    // Predicated region
    $region14: #{tpu_custom_call.1} parent=1 // pred_check
      _
    $region15: #{tpu_custom_call.1} parent=1 // pred_check_branch
      %52 = sbr.rel (0) target = $region17
    $region16: #{tpu_custom_call.1} parent=1 // pred_region
      %s54 = ssub.s32 4096, 4096
      %55 = vsyncadd [#allocation9], %s54
      %s56 = sshll.u32 [#allocation8], 4
      %s57 = int_to_ptr.vmem [resolvable:$true] %s56
      %62 = dma.hbm_to_vmem [thread:$0]  %s3, 4096, %s57, [#allocation9], 64, 64, 4
    $region17: #{tpu_custom_call.1} parent=1 // pred_fallthru
      _
    // Predicated region
    $region18: #{tpu_custom_call.1} parent=1 // pred_check
      _
    $region19: #{tpu_custom_call.1} parent=1 // pred_check_branch
      %64 = sbr.rel (0) target = $region21
    $region20: #{tpu_custom_call.1} parent=1 // pred_region
      _
    $region21: #{tpu_custom_call.1} parent=1 // pred_fallthru
      _
    // Predicated region
    $region22: #{tpu_custom_call.1} parent=1 // pred_check
      _
    $region23: #{tpu_custom_call.1} parent=1 // pred_check_branch
      %66 = sbr.rel (0) target = $region25
    $region24: #{tpu_custom_call.1} parent=1 // pred_region
      %s68 = ssub.s32 1024, 1024
      %69 = vsyncadd [#allocation9], %s68
      %s70 = sshll.u32 [#allocation10], 4
      %s71 = int_to_ptr.vmem [resolvable:$true] %s70
      %76 = dma.hbm_to_vmem [thread:$0]  %s5, 1024, %s71, [#allocation9], 64, 64, 4
    $region25: #{tpu_custom_call.1} parent=1 // pred_fallthru
      _
    // Predicated region
    $region26: #{tpu_custom_call.1} parent=1 // pred_check
      _
    $region27: #{tpu_custom_call.1} parent=1 // pred_check_branch
      %78 = sbr.rel (0) target = $region29
    $region28: #{tpu_custom_call.1} parent=1 // pred_region
      _
    $region29: #{tpu_custom_call.1} parent=1 // pred_fallthru
      _
    // Predicated region
    $region30: #{tpu_custom_call.1} parent=1 // pred_check
      _
    $region31: #{tpu_custom_call.1} parent=1 // pred_check_branch
      %80 = sbr.rel (0) target = $region33
    $region32: #{tpu_custom_call.1} parent=1 // pred_region
      %s82 = ssub.s32 1024, 1024
      %83 = vsyncadd [#allocation12], %s82
      %s84 = sshll.u32 [#allocation11], 4
      %s85 = int_to_ptr.vmem [resolvable:$true] %s84
      %90 = dma.hbm_to_vmem [thread:$0]  %s7, 1024, %s85, [#allocation12], 64, 64, 4
    $region33: #{tpu_custom_call.1} parent=1 // pred_fallthru
      _
    // Predicated region
    $region34: #{tpu_custom_call.1} parent=1 // pred_check
      _
    $region35: #{tpu_custom_call.1} parent=1 // pred_check_branch
      %92 = sbr.rel (0) target = $region37
    $region36: #{tpu_custom_call.1} parent=1 // pred_region
      _
    $region37: #{tpu_custom_call.1} parent=1 // pred_fallthru
      _
    // Predicated region
    $region38: #{tpu_custom_call.1} parent=1 // pred_check
      _
    $region39: #{tpu_custom_call.1} parent=1 // pred_check_branch
      %94 = sbr.rel (0) target = $region41
    $region40: #{tpu_custom_call.1} parent=1 // pred_region
      %95 = dma.done [#allocation3], 64
    $region41: #{tpu_custom_call.1} parent=1 // pred_fallthru
      _
    // Predicated region
    $region42: #{tpu_custom_call.1} parent=1 // pred_check
      _
    $region43: #{tpu_custom_call.1} parent=1 // pred_check_branch
      %97 = sbr.rel (0) target = $region45
    $region44: #{tpu_custom_call.1} parent=1 // pred_region
      %98 = dma.done [#allocation6], 4096
    $region45: #{tpu_custom_call.1} parent=1 // pred_fallthru
      _
    // Predicated region
    $region46: #{tpu_custom_call.1} parent=1 // pred_check
      _
    $region47: #{tpu_custom_call.1} parent=1 // pred_check_branch
      %100 = sbr.rel (0) target = $region49
    $region48: #{tpu_custom_call.1} parent=1 // pred_region
      %101 = dma.done [#allocation6], 64
    $region49: #{tpu_custom_call.1} parent=1 // pred_fallthru
      _
    // Predicated region
    $region50: #{tpu_custom_call.1} parent=1 // pred_check
      _
    $region51: #{tpu_custom_call.1} parent=1 // pred_check_branch
      %103 = sbr.rel (0) target = $region53
    $region52: #{tpu_custom_call.1} parent=1 // pred_region
      %104 = dma.done [#allocation9], 4096
    $region53: #{tpu_custom_call.1} parent=1 // pred_fallthru
      _
    // Predicated region
    $region54: #{tpu_custom_call.1} parent=1 // pred_check
      _
    $region55: #{tpu_custom_call.1} parent=1 // pred_check_branch
      %106 = sbr.rel (0) target = $region57
    $region56: #{tpu_custom_call.1} parent=1 // pred_region
      %107 = dma.done [#allocation9], 1024
    $region57: #{tpu_custom_call.1} parent=1 // pred_fallthru
      _
    // Predicated region
    $region58: #{tpu_custom_call.1} parent=1 // pred_check
      _
    $region59: #{tpu_custom_call.1} parent=1 // pred_check_branch
      %109 = sbr.rel (0) target = $region61
    $region60: #{tpu_custom_call.1} parent=1 // pred_region
      %110 = dma.done [#allocation12], 1024
    $region61: #{tpu_custom_call.1} parent=1 // pred_fallthru
      _
    %v112 = vld [vmem:[#allocation2] sm:$0xf]
    %v113 = vld [vmem:[#allocation5] sm:$0xff]
    %v114 = vld [vmem:[#allocation5 + $0x8] sm:$0xff]
    %v115 = vld [vmem:[#allocation5 + $0x10] sm:$0xff]
    %v116 = vld [vmem:[#allocation5 + $0x18] sm:$0xff]
    %v117 = vld [vmem:[#allocation5 + $0x20] sm:$0xff]
    %v118 = vld [vmem:[#allocation5 + $0x28] sm:$0xff]
    %v119 = vld [vmem:[#allocation5 + $0x30] sm:$0xff]
    %v120 = vld [vmem:[#allocation5 + $0x38] sm:$0xff]
    %v121 = vld [vmem:[#allocation5 + $0x40] sm:$0xff]
    %v122 = vld [vmem:[#allocation5 + $0x48] sm:$0xff]
    %v123 = vld [vmem:[#allocation5 + $0x50] sm:$0xff]
    %v124 = vld [vmem:[#allocation5 + $0x58] sm:$0xff]
    %v125 = vld [vmem:[#allocation5 + $0x60] sm:$0xff]
    %v126 = vld [vmem:[#allocation5 + $0x68] sm:$0xff]
    %v127 = vld [vmem:[#allocation5 + $0x70] sm:$0xff]
    %v128 = vld [vmem:[#allocation5 + $0x78] sm:$0xff]
    %v129 = vld [vmem:[#allocation5 + $0x80] sm:$0xff]
    %v130 = vld [vmem:[#allocation5 + $0x88] sm:$0xff]
    %v131 = vld [vmem:[#allocation5 + $0x90] sm:$0xff]
    %v132 = vld [vmem:[#allocation5 + $0x98] sm:$0xff]
    %v133 = vld [vmem:[#allocation5 + $0xa0] sm:$0xff]
    %v134 = vld [vmem:[#allocation5 + $0xa8] sm:$0xff]
    %v135 = vld [vmem:[#allocation5 + $0xb0] sm:$0xff]
    %v136 = vld [vmem:[#allocation5 + $0xb8] sm:$0xff]
    %v137 = vld [vmem:[#allocation5 + $0xc0] sm:$0xff]
    %v138 = vld [vmem:[#allocation5 + $0xc8] sm:$0xff]
    %v139 = vld [vmem:[#allocation5 + $0xd0] sm:$0xff]
    %v140 = vld [vmem:[#allocation5 + $0xd8] sm:$0xff]
    %v141 = vld [vmem:[#allocation5 + $0xe0] sm:$0xff]
    %v142 = vld [vmem:[#allocation5 + $0xe8] sm:$0xff]
    %v143 = vld [vmem:[#allocation5 + $0xf0] sm:$0xff]
    %v144 = vld [vmem:[#allocation5 + $0xf8] sm:$0xff]
    %v145 = vld [vmem:[#allocation7] sm:$0xf]
    %v147 = vlaneseq
    %v148 = vshrl.u32 %v147, 7
    %v149 = vsub.s32 0, %v148
    %v150 = vrot.slane %v145, %v149
    %v151 = vlaneseq
    %v152 = vshrl.u32 %v151, 7
    %v153 = vsub.s32 1, %v152
    %v154 = vrot.slane %v145, %v153
    %v155 = vlaneseq
    %v156 = vshrl.u32 %v155, 7
    %v157 = vsub.s32 2, %v156
    %v158 = vrot.slane %v145, %v157
    %v159 = vlaneseq
    %v160 = vshrl.u32 %v159, 7
    %v161 = vsub.s32 3, %v160
    %v162 = vrot.slane %v145, %v161
    %v199 = vunpack.c.l.b16 %v113
    %v200 = vunpack.c.h.b16 %v113
    %v201 = vunpack.c.l.b16 %v114
    %v202 = vunpack.c.h.b16 %v114
    %v203 = vunpack.c.l.b16 %v115
    %v204 = vunpack.c.h.b16 %v115
    %v205 = vunpack.c.l.b16 %v116
    %v206 = vunpack.c.h.b16 %v116
    %v207 = vunpack.c.l.b16 %v117
    %v208 = vunpack.c.h.b16 %v117
    %v209 = vunpack.c.l.b16 %v118
    %v210 = vunpack.c.h.b16 %v118
    %v211 = vunpack.c.l.b16 %v119
    %v212 = vunpack.c.h.b16 %v119
    %v213 = vunpack.c.l.b16 %v120
    %v214 = vunpack.c.h.b16 %v120
    %v215 = vunpack.c.l.b16 %v121
    %v216 = vunpack.c.h.b16 %v121
    %v217 = vunpack.c.l.b16 %v122
    %v218 = vunpack.c.h.b16 %v122
    %v219 = vunpack.c.l.b16 %v123
    %v220 = vunpack.c.h.b16 %v123
    %v221 = vunpack.c.l.b16 %v124
    %v222 = vunpack.c.h.b16 %v124
    %v223 = vunpack.c.l.b16 %v125
    %v224 = vunpack.c.h.b16 %v125
    %v225 = vunpack.c.l.b16 %v126
    %v226 = vunpack.c.h.b16 %v126
    %v227 = vunpack.c.l.b16 %v127
    %v228 = vunpack.c.h.b16 %v127
    %v229 = vunpack.c.l.b16 %v128
    %v230 = vunpack.c.h.b16 %v128
    %v231 = vunpack.c.l.b16 %v129
    %v232 = vunpack.c.h.b16 %v129
    %v233 = vunpack.c.l.b16 %v130
    %v234 = vunpack.c.h.b16 %v130
    %v235 = vunpack.c.l.b16 %v131
    %v236 = vunpack.c.h.b16 %v131
    %v237 = vunpack.c.l.b16 %v132
    %v238 = vunpack.c.h.b16 %v132
    %v239 = vunpack.c.l.b16 %v133
    %v240 = vunpack.c.h.b16 %v133
    %v241 = vunpack.c.l.b16 %v134
    %v242 = vunpack.c.h.b16 %v134
    %v243 = vunpack.c.l.b16 %v135
    %v244 = vunpack.c.h.b16 %v135
    %v245 = vunpack.c.l.b16 %v136
    %v246 = vunpack.c.h.b16 %v136
    %v247 = vunpack.c.l.b16 %v137
    %v248 = vunpack.c.h.b16 %v137
    %v249 = vunpack.c.l.b16 %v138
    %v250 = vunpack.c.h.b16 %v138
    %v251 = vunpack.c.l.b16 %v139
    %v252 = vunpack.c.h.b16 %v139
    %v253 = vunpack.c.l.b16 %v140
    %v254 = vunpack.c.h.b16 %v140
    %v255 = vunpack.c.l.b16 %v141
    %v256 = vunpack.c.h.b16 %v141
    %v257 = vunpack.c.l.b16 %v142
    %v258 = vunpack.c.h.b16 %v142
    %v259 = vunpack.c.l.b16 %v143
    %v260 = vunpack.c.h.b16 %v143
    %v261 = vunpack.c.l.b16 %v144
    %v262 = vunpack.c.h.b16 %v144
    %v263 = vpack.c.b16 %v203, %v199
    %v264 = vpack.c.b16 %v204, %v200
    %v265 = vpack.c.b16 %v205, %v201
    %v266 = vpack.c.b16 %v206, %v202
    %v267 = vpack.c.b16 %v211, %v207
    %v268 = vpack.c.b16 %v212, %v208
    %v269 = vpack.c.b16 %v213, %v209
    %v270 = vpack.c.b16 %v214, %v210
    %v271 = vpack.c.b16 %v219, %v215
    %v272 = vpack.c.b16 %v220, %v216
    %v273 = vpack.c.b16 %v221, %v217
    %v274 = vpack.c.b16 %v222, %v218
    %v275 = vpack.c.b16 %v227, %v223
    %v276 = vpack.c.b16 %v228, %v224
    %v277 = vpack.c.b16 %v229, %v225
    %v278 = vpack.c.b16 %v230, %v226
    %v279 = vpack.c.b16 %v235, %v231
    %v280 = vpack.c.b16 %v236, %v232
    %v281 = vpack.c.b16 %v237, %v233
    %v282 = vpack.c.b16 %v238, %v234
    %v283 = vpack.c.b16 %v243, %v239
    %v284 = vpack.c.b16 %v244, %v240
    %v285 = vpack.c.b16 %v245, %v241
    %v286 = vpack.c.b16 %v246, %v242
    %v287 = vpack.c.b16 %v251, %v247
    %v288 = vpack.c.b16 %v252, %v248
    %v289 = vpack.c.b16 %v253, %v249
    %v290 = vpack.c.b16 %v254, %v250
    %v291 = vpack.c.b16 %v259, %v255
    %v292 = vpack.c.b16 %v260, %v256
    %v293 = vpack.c.b16 %v261, %v257
    %v294 = vpack.c.b16 %v262, %v258
    %327 = vmatprep.subr.bf16.mxu0 %v292
    %328 = vmatpush1.bf16.msra.mxu0 %v291
    %329 = vmatprep.subr.bf16.mxu0 %v288
    %330 = vmatpush1.bf16.msra.mxu0 %v287
    %331 = vmatprep.subr.bf16.mxu0 %v284
    %332 = vmatpush1.bf16.msra.mxu0 %v283
    %333 = vmatprep.subr.bf16.mxu0 %v280
    %334 = vmatpush1.bf16.msra.mxu0 %v279
    %335 = vmatprep.subr.bf16.mxu0 %v276
    %336 = vmatpush1.bf16.msra.mxu0 %v275
    %337 = vmatprep.subr.bf16.mxu0 %v272
    %338 = vmatpush1.bf16.msra.mxu0 %v271
    %339 = vmatprep.subr.bf16.mxu0 %v268
    %340 = vmatpush1.bf16.msra.mxu0 %v267
    %341 = vmatprep.subr.bf16.mxu0 %v264
    %342 = vmatpush1.bf16.msra.mxu0 %v263
    %343 = vmatprep.subr.bf16.mxu0 0
    %344 = vmatpush2.bf16.msra.mxu0 0
    %345 = vmatprep.subr.bf16.mxu0 0
    %346 = vmatpush2.bf16.msra.mxu0 0
    %347 = vmatprep.subr.bf16.mxu0 0
    %348 = vmatpush2.bf16.msra.mxu0 0
    %349 = vmatprep.subr.bf16.mxu0 0
    %350 = vmatpush2.bf16.msra.mxu0 0
    %351 = vmatprep.subr.bf16.mxu0 0
    %352 = vmatpush2.bf16.msra.mxu0 0
    %353 = vmatprep.subr.bf16.mxu0 0
    %354 = vmatpush2.bf16.msra.mxu0 0
    %355 = vmatprep.subr.bf16.mxu0 0
    %356 = vmatpush2.bf16.msra.mxu0 0
    %357 = vmatprep.subr.bf16.mxu0 0
    %358 = vmatpush2.bf16.msra.mxu0 0
    %359 = vmatprep.mubr.bf16.mxu0 0
    %360 = vmatmul.mubr.bf16.gmra.mxu0 %v112
    %v361 = vpop.f32.mrf.mxu0
    %v362 = vadd.f32 %v150, %v361
    %v363 = vpop.f32.mrf.mxu0
    %v364 = vadd.f32 %v154, %v363
    %v365 = vpop.f32.mrf.mxu0
    %v366 = vpop.f32.mrf.mxu0
    %367 = vdwg.mxu0
    %368 = vmatprep.subr.bf16.mxu0 %v294
    %369 = vmatpush1.bf16.msra.mxu0 %v293
    %370 = vmatprep.subr.bf16.mxu0 %v290
    %371 = vmatpush1.bf16.msra.mxu0 %v289
    %372 = vmatprep.subr.bf16.mxu0 %v286
    %373 = vmatpush1.bf16.msra.mxu0 %v285
    %374 = vmatprep.subr.bf16.mxu0 %v282
    %375 = vmatpush1.bf16.msra.mxu0 %v281
    %376 = vmatprep.subr.bf16.mxu0 %v278
    %377 = vmatpush1.bf16.msra.mxu0 %v277
    %378 = vmatprep.subr.bf16.mxu0 %v274
    %379 = vmatpush1.bf16.msra.mxu0 %v273
    %380 = vmatprep.subr.bf16.mxu0 %v270
    %381 = vmatpush1.bf16.msra.mxu0 %v269
    %382 = vmatprep.subr.bf16.mxu0 %v266
    %383 = vmatpush1.bf16.msra.mxu0 %v265
    %384 = vmatprep.subr.bf16.mxu0 0
    %385 = vmatpush2.bf16.msra.mxu0 0
    %386 = vmatprep.subr.bf16.mxu0 0
    %387 = vmatpush2.bf16.msra.mxu0 0
    %388 = vmatprep.subr.bf16.mxu0 0
    %389 = vmatpush2.bf16.msra.mxu0 0
    %390 = vmatprep.subr.bf16.mxu0 0
    %391 = vmatpush2.bf16.msra.mxu0 0
    %392 = vmatprep.subr.bf16.mxu0 0
    %393 = vmatpush2.bf16.msra.mxu0 0
    %394 = vmatprep.subr.bf16.mxu0 0
    %395 = vmatpush2.bf16.msra.mxu0 0
    %396 = vmatprep.subr.bf16.mxu0 0
    %397 = vmatpush2.bf16.msra.mxu0 0
    %398 = vmatprep.subr.bf16.mxu0 0
    %399 = vmatpush2.bf16.msra.mxu0 0
    %400 = vmatprep.mubr.bf16.mxu0 0
    %401 = vmatmul.mubr.bf16.gmra.mxu0 %v112
    %v402 = vpop.f32.mrf.mxu0
    %v403 = vadd.f32 %v158, %v402
    %v404 = vpop.f32.mrf.mxu0
    %v405 = vadd.f32 %v162, %v404
    %v406 = vpop.f32.mrf.mxu0
    %v407 = vpop.f32.mrf.mxu0
    %408 = vdwg.mxu0
    %v409 = vmax.f32 %v362, 0.0
    %v410 = vmax.f32 %v364, 0.0
    %v411 = vmax.f32 %v403, 0.0
    %v412 = vmax.f32 %v405, 0.0
    %v413 = vpack.c.bf16 %v409, %v409
    %v414 = vpack.c.bf16 %v410, %v410
    %v415 = vpack.c.bf16 %v411, %v411
    %v416 = vpack.c.bf16 %v412, %v412
    %v417 = vld [vmem:[#allocation8] sm:$0xf]
    %v418 = vld [vmem:[#allocation8 + $0x4] sm:$0xf]
    %v419 = vld [vmem:[#allocation8 + $0x8] sm:$0xf]
    %v420 = vld [vmem:[#allocation8 + $0xc] sm:$0xf]
    %v421 = vld [vmem:[#allocation8 + $0x10] sm:$0xf]
    %v422 = vld [vmem:[#allocation8 + $0x14] sm:$0xf]
    %v423 = vld [vmem:[#allocation8 + $0x18] sm:$0xf]
    %v424 = vld [vmem:[#allocation8 + $0x1c] sm:$0xf]
    %v425 = vld [vmem:[#allocation8 + $0x20] sm:$0xf]
    %v426 = vld [vmem:[#allocation8 + $0x24] sm:$0xf]
    %v427 = vld [vmem:[#allocation8 + $0x28] sm:$0xf]
    %v428 = vld [vmem:[#allocation8 + $0x2c] sm:$0xf]
    %v429 = vld [vmem:[#allocation8 + $0x30] sm:$0xf]
    %v430 = vld [vmem:[#allocation8 + $0x34] sm:$0xf]
    %v431 = vld [vmem:[#allocation8 + $0x38] sm:$0xf]
    %v432 = vld [vmem:[#allocation8 + $0x3c] sm:$0xf]
    %v433 = vld [vmem:[#allocation8 + $0x40] sm:$0xf]
    %v434 = vld [vmem:[#allocation8 + $0x44] sm:$0xf]
    %v435 = vld [vmem:[#allocation8 + $0x48] sm:$0xf]
    %v436 = vld [vmem:[#allocation8 + $0x4c] sm:$0xf]
    %v437 = vld [vmem:[#allocation8 + $0x50] sm:$0xf]
    %v438 = vld [vmem:[#allocation8 + $0x54] sm:$0xf]
    %v439 = vld [vmem:[#allocation8 + $0x58] sm:$0xf]
    %v440 = vld [vmem:[#allocation8 + $0x5c] sm:$0xf]
    %v441 = vld [vmem:[#allocation8 + $0x60] sm:$0xf]
    %v442 = vld [vmem:[#allocation8 + $0x64] sm:$0xf]
    %v443 = vld [vmem:[#allocation8 + $0x68] sm:$0xf]
    %v444 = vld [vmem:[#allocation8 + $0x6c] sm:$0xf]
    %v445 = vld [vmem:[#allocation8 + $0x70] sm:$0xf]
    %v446 = vld [vmem:[#allocation8 + $0x74] sm:$0xf]
    %v447 = vld [vmem:[#allocation8 + $0x78] sm:$0xf]
    %v448 = vld [vmem:[#allocation8 + $0x7c] sm:$0xf]
    %v449 = vld [vmem:[#allocation8 + $0x80] sm:$0xf]
    %v450 = vld [vmem:[#allocation8 + $0x84] sm:$0xf]
    %v451 = vld [vmem:[#allocation8 + $0x88] sm:$0xf]
    %v452 = vld [vmem:[#allocation8 + $0x8c] sm:$0xf]
    %v453 = vld [vmem:[#allocation8 + $0x90] sm:$0xf]
    %v454 = vld [vmem:[#allocation8 + $0x94] sm:$0xf]
    %v455 = vld [vmem:[#allocation8 + $0x98] sm:$0xf]
    %v456 = vld [vmem:[#allocation8 + $0x9c] sm:$0xf]
    %v457 = vld [vmem:[#allocation8 + $0xa0] sm:$0xf]
    %v458 = vld [vmem:[#allocation8 + $0xa4] sm:$0xf]
    %v459 = vld [vmem:[#allocation8 + $0xa8] sm:$0xf]
    %v460 = vld [vmem:[#allocation8 + $0xac] sm:$0xf]
    %v461 = vld [vmem:[#allocation8 + $0xb0] sm:$0xf]
    %v462 = vld [vmem:[#allocation8 + $0xb4] sm:$0xf]
    %v463 = vld [vmem:[#allocation8 + $0xb8] sm:$0xf]
    %v464 = vld [vmem:[#allocation8 + $0xbc] sm:$0xf]
    %v465 = vld [vmem:[#allocation8 + $0xc0] sm:$0xf]
    %v466 = vld [vmem:[#allocation8 + $0xc4] sm:$0xf]
    %v467 = vld [vmem:[#allocation8 + $0xc8] sm:$0xf]
    %v468 = vld [vmem:[#allocation8 + $0xcc] sm:$0xf]
    %v469 = vld [vmem:[#allocation8 + $0xd0] sm:$0xf]
    %v470 = vld [vmem:[#allocation8 + $0xd4] sm:$0xf]
    %v471 = vld [vmem:[#allocation8 + $0xd8] sm:$0xf]
    %v472 = vld [vmem:[#allocation8 + $0xdc] sm:$0xf]
    %v473 = vld [vmem:[#allocation8 + $0xe0] sm:$0xf]
    %v474 = vld [vmem:[#allocation8 + $0xe4] sm:$0xf]
    %v475 = vld [vmem:[#allocation8 + $0xe8] sm:$0xf]
    %v476 = vld [vmem:[#allocation8 + $0xec] sm:$0xf]
    %v477 = vld [vmem:[#allocation8 + $0xf0] sm:$0xf]
    %v478 = vld [vmem:[#allocation8 + $0xf4] sm:$0xf]
    %v479 = vld [vmem:[#allocation8 + $0xf8] sm:$0xf]
    %v480 = vld [vmem:[#allocation8 + $0xfc] sm:$0xf]
    %v481 = vld [vmem:[%s4] sm:$0x1]
    %v483 = vlaneseq
    %v484 = vshrl.u32 %v483, 7
    %v485 = vsub.s32 0, %v484
    %v486 = vrot.slane %v481, %v485
    %v552 = vunpack.c.l.b16 %v417
    %v553 = vunpack.c.l.b16 %v418
    %v554 = vunpack.c.l.b16 %v419
    %v555 = vunpack.c.l.b16 %v420
    %v556 = vunpack.c.l.b16 %v421
    %v557 = vunpack.c.l.b16 %v422
    %v558 = vunpack.c.l.b16 %v423
    %v559 = vunpack.c.l.b16 %v424
    %v560 = vunpack.c.l.b16 %v425
    %v561 = vunpack.c.l.b16 %v426
    %v562 = vunpack.c.l.b16 %v427
    %v563 = vunpack.c.l.b16 %v428
    %v564 = vunpack.c.l.b16 %v429
    %v565 = vunpack.c.l.b16 %v430
    %v566 = vunpack.c.l.b16 %v431
    %v567 = vunpack.c.l.b16 %v432
    %v568 = vunpack.c.l.b16 %v433
    %v569 = vunpack.c.l.b16 %v434
    %v570 = vunpack.c.l.b16 %v435
    %v571 = vunpack.c.l.b16 %v436
    %v572 = vunpack.c.l.b16 %v437
    %v573 = vunpack.c.l.b16 %v438
    %v574 = vunpack.c.l.b16 %v439
    %v575 = vunpack.c.l.b16 %v440
    %v576 = vunpack.c.l.b16 %v441
    %v577 = vunpack.c.l.b16 %v442
    %v578 = vunpack.c.l.b16 %v443
    %v579 = vunpack.c.l.b16 %v444
    %v580 = vunpack.c.l.b16 %v445
    %v581 = vunpack.c.l.b16 %v446
    %v582 = vunpack.c.l.b16 %v447
    %v583 = vunpack.c.l.b16 %v448
    %v584 = vunpack.c.l.b16 %v449
    %v585 = vunpack.c.l.b16 %v450
    %v586 = vunpack.c.l.b16 %v451
    %v587 = vunpack.c.l.b16 %v452
    %v588 = vunpack.c.l.b16 %v453
    %v589 = vunpack.c.l.b16 %v454
    %v590 = vunpack.c.l.b16 %v455
    %v591 = vunpack.c.l.b16 %v456
    %v592 = vunpack.c.l.b16 %v457
    %v593 = vunpack.c.l.b16 %v458
    %v594 = vunpack.c.l.b16 %v459
    %v595 = vunpack.c.l.b16 %v460
    %v596 = vunpack.c.l.b16 %v461
    %v597 = vunpack.c.l.b16 %v462
    %v598 = vunpack.c.l.b16 %v463
    %v599 = vunpack.c.l.b16 %v464
    %v600 = vunpack.c.l.b16 %v465
    %v601 = vunpack.c.l.b16 %v466
    %v602 = vunpack.c.l.b16 %v467
    %v603 = vunpack.c.l.b16 %v468
    %v604 = vunpack.c.l.b16 %v469
    %v605 = vunpack.c.l.b16 %v470
    %v606 = vunpack.c.l.b16 %v471
    %v607 = vunpack.c.l.b16 %v472
    %v608 = vunpack.c.l.b16 %v473
    %v609 = vunpack.c.l.b16 %v474
    %v610 = vunpack.c.l.b16 %v475
    %v611 = vunpack.c.l.b16 %v476
    %v612 = vunpack.c.l.b16 %v477
    %v613 = vunpack.c.l.b16 %v478
    %v614 = vunpack.c.l.b16 %v479
    %v615 = vunpack.c.l.b16 %v480
    %v616 = vpack.c.b16 %v553, %v552
    %v617 = vpack.c.b16 %v555, %v554
    %v618 = vpack.c.b16 %v557, %v556
    %v619 = vpack.c.b16 %v559, %v558
    %v620 = vpack.c.b16 %v561, %v560
    %v621 = vpack.c.b16 %v563, %v562
    %v622 = vpack.c.b16 %v565, %v564
    %v623 = vpack.c.b16 %v567, %v566
    %v624 = vpack.c.b16 %v569, %v568
    %v625 = vpack.c.b16 %v571, %v570
    %v626 = vpack.c.b16 %v573, %v572
    %v627 = vpack.c.b16 %v575, %v574
    %v628 = vpack.c.b16 %v577, %v576
    %v629 = vpack.c.b16 %v579, %v578
    %v630 = vpack.c.b16 %v581, %v580
    %v631 = vpack.c.b16 %v583, %v582
    %v632 = vpack.c.b16 %v585, %v584
    %v633 = vpack.c.b16 %v587, %v586
    %v634 = vpack.c.b16 %v589, %v588
    %v635 = vpack.c.b16 %v591, %v590
    %v636 = vpack.c.b16 %v593, %v592
    %v637 = vpack.c.b16 %v595, %v594
    %v638 = vpack.c.b16 %v597, %v596
    %v639 = vpack.c.b16 %v599, %v598
    %v640 = vpack.c.b16 %v601, %v600
    %v641 = vpack.c.b16 %v603, %v602
    %v642 = vpack.c.b16 %v605, %v604
    %v643 = vpack.c.b16 %v607, %v606
    %v644 = vpack.c.b16 %v609, %v608
    %v645 = vpack.c.b16 %v611, %v610
    %v646 = vpack.c.b16 %v613, %v612
    %v647 = vpack.c.b16 %v615, %v614
    %680 = vmatprep.subr.bf16.mxu0 0
    %681 = vmatpush1.bf16.msra.mxu0 %v623
    %682 = vmatprep.subr.bf16.mxu0 0
    %683 = vmatpush1.bf16.msra.mxu0 %v622
    %684 = vmatprep.subr.bf16.mxu0 0
    %685 = vmatpush1.bf16.msra.mxu0 %v621
    %686 = vmatprep.subr.bf16.mxu0 0
    %687 = vmatpush1.bf16.msra.mxu0 %v620
    %688 = vmatprep.subr.bf16.mxu0 0
    %689 = vmatpush1.bf16.msra.mxu0 %v619
    %690 = vmatprep.subr.bf16.mxu0 0
    %691 = vmatpush1.bf16.msra.mxu0 %v618
    %692 = vmatprep.subr.bf16.mxu0 0
    %693 = vmatpush1.bf16.msra.mxu0 %v617
    %694 = vmatprep.subr.bf16.mxu0 0
    %695 = vmatpush1.bf16.msra.mxu0 %v616
    %696 = vmatprep.subr.bf16.mxu0 0
    %697 = vmatpush2.bf16.msra.mxu0 %v631
    %698 = vmatprep.subr.bf16.mxu0 0
    %699 = vmatpush2.bf16.msra.mxu0 %v630
    %700 = vmatprep.subr.bf16.mxu0 0
    %701 = vmatpush2.bf16.msra.mxu0 %v629
    %702 = vmatprep.subr.bf16.mxu0 0
    %703 = vmatpush2.bf16.msra.mxu0 %v628
    %704 = vmatprep.subr.bf16.mxu0 0
    %705 = vmatpush2.bf16.msra.mxu0 %v627
    %706 = vmatprep.subr.bf16.mxu0 0
    %707 = vmatpush2.bf16.msra.mxu0 %v626
    %708 = vmatprep.subr.bf16.mxu0 0
    %709 = vmatpush2.bf16.msra.mxu0 %v625
    %710 = vmatprep.subr.bf16.mxu0 0
    %711 = vmatpush2.bf16.msra.mxu0 %v624
    %712 = vmatprep.mubr.bf16.mxu0 %v414
    %713 = vmatmul.mubr.bf16.gmra.mxu0 %v413
    %v714 = vpop.f32.mrf.mxu0
    %v715 = vadd.f32 %v486, %v714
    %v716 = vpop.f32.mrf.mxu0
    %v717 = vpop.f32.mrf.mxu0
    %v718 = vpop.f32.mrf.mxu0
    %719 = vdwg.mxu0
    %720 = vmatprep.subr.bf16.mxu0 0
    %721 = vmatpush1.bf16.msra.mxu0 %v639
    %722 = vmatprep.subr.bf16.mxu0 0
    %723 = vmatpush1.bf16.msra.mxu0 %v638
    %724 = vmatprep.subr.bf16.mxu0 0
    %725 = vmatpush1.bf16.msra.mxu0 %v637
    %726 = vmatprep.subr.bf16.mxu0 0
    %727 = vmatpush1.bf16.msra.mxu0 %v636
    %728 = vmatprep.subr.bf16.mxu0 0
    %729 = vmatpush1.bf16.msra.mxu0 %v635
    %730 = vmatprep.subr.bf16.mxu0 0
    %731 = vmatpush1.bf16.msra.mxu0 %v634
    %732 = vmatprep.subr.bf16.mxu0 0
    %733 = vmatpush1.bf16.msra.mxu0 %v633
    %734 = vmatprep.subr.bf16.mxu0 0
    %735 = vmatpush1.bf16.msra.mxu0 %v632
    %736 = vmatprep.subr.bf16.mxu0 0
    %737 = vmatpush2.bf16.msra.mxu0 %v647
    %738 = vmatprep.subr.bf16.mxu0 0
    %739 = vmatpush2.bf16.msra.mxu0 %v646
    %740 = vmatprep.subr.bf16.mxu0 0
    %741 = vmatpush2.bf16.msra.mxu0 %v645
    %742 = vmatprep.subr.bf16.mxu0 0
    %743 = vmatpush2.bf16.msra.mxu0 %v644
    %744 = vmatprep.subr.bf16.mxu0 0
    %745 = vmatpush2.bf16.msra.mxu0 %v643
    %746 = vmatprep.subr.bf16.mxu0 0
    %747 = vmatpush2.bf16.msra.mxu0 %v642
    %748 = vmatprep.subr.bf16.mxu0 0
    %749 = vmatpush2.bf16.msra.mxu0 %v641
    %750 = vmatprep.subr.bf16.mxu0 0
    %751 = vmatpush2.bf16.msra.mxu0 %v640
    %752 = vmatprep.mubr.bf16.mxu0 %v416
    %753 = vmatmul.mubr.bf16.gmra.mxu0 %v415
    %v754 = vpop.f32.mrf.mxu0
    %v755 = vadd.f32 %v715, %v754
    %v756 = vpop.f32.mrf.mxu0
    %v757 = vpop.f32.mrf.mxu0
    %v758 = vpop.f32.mrf.mxu0
    %759 = vdwg.mxu0
    %v760 = vmax.f32 %v755, 0.0
    %v761 = vpack.c.bf16 %v760, %v760
    %v762 = vld [vmem:[#allocation10] sm:$0xf]
    %v763 = vld [vmem:[#allocation10 + $0x4] sm:$0xf]
    %v764 = vld [vmem:[#allocation10 + $0x8] sm:$0xf]
    %v765 = vld [vmem:[#allocation10 + $0xc] sm:$0xf]
    %v766 = vld [vmem:[#allocation10 + $0x10] sm:$0xf]
    %v767 = vld [vmem:[#allocation10 + $0x14] sm:$0xf]
    %v768 = vld [vmem:[#allocation10 + $0x18] sm:$0xf]
    %v769 = vld [vmem:[#allocation10 + $0x1c] sm:$0xf]
    %v770 = vld [vmem:[#allocation10 + $0x20] sm:$0xf]
    %v771 = vld [vmem:[#allocation10 + $0x24] sm:$0xf]
    %v772 = vld [vmem:[#allocation10 + $0x28] sm:$0xf]
    %v773 = vld [vmem:[#allocation10 + $0x2c] sm:$0xf]
    %v774 = vld [vmem:[#allocation10 + $0x30] sm:$0xf]
    %v775 = vld [vmem:[#allocation10 + $0x34] sm:$0xf]
    %v776 = vld [vmem:[#allocation10 + $0x38] sm:$0xf]
    %v777 = vld [vmem:[#allocation10 + $0x3c] sm:$0xf]
    %v778 = vld [vmem:[%s6] sm:$0x1]
    %v780 = vlaneseq
    %v781 = vshrl.u32 %v780, 7
    %v782 = vsub.s32 0, %v781
    %v783 = vrot.slane %v778, %v782
    %v801 = vunpack.c.l.b16 %v762
    %v802 = vunpack.c.l.b16 %v763
    %v803 = vunpack.c.l.b16 %v764
    %v804 = vunpack.c.l.b16 %v765
    %v805 = vunpack.c.l.b16 %v766
    %v806 = vunpack.c.l.b16 %v767
    %v807 = vunpack.c.l.b16 %v768
    %v808 = vunpack.c.l.b16 %v769
    %v809 = vunpack.c.l.b16 %v770
    %v810 = vunpack.c.l.b16 %v771
    %v811 = vunpack.c.l.b16 %v772
    %v812 = vunpack.c.l.b16 %v773
    %v813 = vunpack.c.l.b16 %v774
    %v814 = vunpack.c.l.b16 %v775
    %v815 = vunpack.c.l.b16 %v776
    %v816 = vunpack.c.l.b16 %v777
    %v817 = vpack.c.b16 %v802, %v801
    %v818 = vpack.c.b16 %v804, %v803
    %v819 = vpack.c.b16 %v806, %v805
    %v820 = vpack.c.b16 %v808, %v807
    %v821 = vpack.c.b16 %v810, %v809
    %v822 = vpack.c.b16 %v812, %v811
    %v823 = vpack.c.b16 %v814, %v813
    %v824 = vpack.c.b16 %v816, %v815
    %833 = vmatprep.subr.bf16.mxu0 0
    %834 = vmatpush1.bf16.msra.mxu0 %v824
    %835 = vmatprep.subr.bf16.mxu0 0
    %836 = vmatpush1.bf16.msra.mxu0 %v823
    %837 = vmatprep.subr.bf16.mxu0 0
    %838 = vmatpush1.bf16.msra.mxu0 %v822
    %839 = vmatprep.subr.bf16.mxu0 0
    %840 = vmatpush1.bf16.msra.mxu0 %v821
    %841 = vmatprep.subr.bf16.mxu0 0
    %842 = vmatpush1.bf16.msra.mxu0 %v820
    %843 = vmatprep.subr.bf16.mxu0 0
    %844 = vmatpush1.bf16.msra.mxu0 %v819
    %845 = vmatprep.subr.bf16.mxu0 0
    %846 = vmatpush1.bf16.msra.mxu0 %v818
    %847 = vmatprep.subr.bf16.mxu0 0
    %848 = vmatpush1.bf16.msra.mxu0 %v817
    %849 = vmatprep.subr.bf16.mxu0 0
    %850 = vmatpush2.bf16.msra.mxu0 0
    %851 = vmatprep.subr.bf16.mxu0 0
    %852 = vmatpush2.bf16.msra.mxu0 0
    %853 = vmatprep.subr.bf16.mxu0 0
    %854 = vmatpush2.bf16.msra.mxu0 0
    %855 = vmatprep.subr.bf16.mxu0 0
    %856 = vmatpush2.bf16.msra.mxu0 0
    %857 = vmatprep.subr.bf16.mxu0 0
    %858 = vmatpush2.bf16.msra.mxu0 0
    %859 = vmatprep.subr.bf16.mxu0 0
    %860 = vmatpush2.bf16.msra.mxu0 0
    %861 = vmatprep.subr.bf16.mxu0 0
    %862 = vmatpush2.bf16.msra.mxu0 0
    %863 = vmatprep.subr.bf16.mxu0 0
    %864 = vmatpush2.bf16.msra.mxu0 0
    %865 = vmatprep.mubr.bf16.mxu0 0
    %866 = vmatmul.mubr.bf16.gmra.mxu0 %v761
    %v867 = vpop.f32.mrf.mxu0
    %v868 = vadd.f32 %v783, %v867
    %v869 = vpop.f32.mrf.mxu0
    %v870 = vpop.f32.mrf.mxu0
    %v871 = vpop.f32.mrf.mxu0
    %872 = vdwg.mxu0
    %v873 = vmax.f32 %v868, 0.0
    %v874 = vpack.c.bf16 %v873, %v873
    %v875 = vld [vmem:[#allocation11] sm:$0xf]
    %v876 = vld [vmem:[#allocation11 + $0x4] sm:$0xf]
    %v877 = vld [vmem:[#allocation11 + $0x8] sm:$0xf]
    %v878 = vld [vmem:[#allocation11 + $0xc] sm:$0xf]
    %v879 = vld [vmem:[#allocation11 + $0x10] sm:$0xf]
    %v880 = vld [vmem:[#allocation11 + $0x14] sm:$0xf]
    %v881 = vld [vmem:[#allocation11 + $0x18] sm:$0xf]
    %v882 = vld [vmem:[#allocation11 + $0x1c] sm:$0xf]
    %v883 = vld [vmem:[#allocation11 + $0x20] sm:$0xf]
    %v884 = vld [vmem:[#allocation11 + $0x24] sm:$0xf]
    %v885 = vld [vmem:[#allocation11 + $0x28] sm:$0xf]
    %v886 = vld [vmem:[#allocation11 + $0x2c] sm:$0xf]
    %v887 = vld [vmem:[#allocation11 + $0x30] sm:$0xf]
    %v888 = vld [vmem:[#allocation11 + $0x34] sm:$0xf]
    %v889 = vld [vmem:[#allocation11 + $0x38] sm:$0xf]
    %v890 = vld [vmem:[#allocation11 + $0x3c] sm:$0xf]
    %v891 = vld [vmem:[%s8] sm:$0x1]
    %v893 = vlaneseq
    %v894 = vshrl.u32 %v893, 7
    %v895 = vsub.s32 0, %v894
    %v896 = vrot.slane %v891, %v895
    %v914 = vunpack.c.l.b16 %v875
    %v915 = vunpack.c.l.b16 %v876
    %v916 = vunpack.c.l.b16 %v877
    %v917 = vunpack.c.l.b16 %v878
    %v918 = vunpack.c.l.b16 %v879
    %v919 = vunpack.c.l.b16 %v880
    %v920 = vunpack.c.l.b16 %v881
    %v921 = vunpack.c.l.b16 %v882
    %v922 = vunpack.c.l.b16 %v883
    %v923 = vunpack.c.l.b16 %v884
    %v924 = vunpack.c.l.b16 %v885
    %v925 = vunpack.c.l.b16 %v886
    %v926 = vunpack.c.l.b16 %v887
    %v927 = vunpack.c.l.b16 %v888
    %v928 = vunpack.c.l.b16 %v889
    %v929 = vunpack.c.l.b16 %v890
    %v930 = vpack.c.b16 %v915, %v914
    %v931 = vpack.c.b16 %v917, %v916
    %v932 = vpack.c.b16 %v919, %v918
    %v933 = vpack.c.b16 %v921, %v920
    %v934 = vpack.c.b16 %v923, %v922
    %v935 = vpack.c.b16 %v925, %v924
    %v936 = vpack.c.b16 %v927, %v926
    %v937 = vpack.c.b16 %v929, %v928
    %946 = vmatprep.subr.bf16.mxu0 0
    %947 = vmatpush1.bf16.msra.mxu0 %v937
    %948 = vmatprep.subr.bf16.mxu0 0
    %949 = vmatpush1.bf16.msra.mxu0 %v936
    %950 = vmatprep.subr.bf16.mxu0 0
    %951 = vmatpush1.bf16.msra.mxu0 %v935
    %952 = vmatprep.subr.bf16.mxu0 0
    %953 = vmatpush1.bf16.msra.mxu0 %v934
    %954 = vmatprep.subr.bf16.mxu0 0
    %955 = vmatpush1.bf16.msra.mxu0 %v933
    %956 = vmatprep.subr.bf16.mxu0 0
    %957 = vmatpush1.bf16.msra.mxu0 %v932
    %958 = vmatprep.subr.bf16.mxu0 0
    %959 = vmatpush1.bf16.msra.mxu0 %v931
    %960 = vmatprep.subr.bf16.mxu0 0
    %961 = vmatpush1.bf16.msra.mxu0 %v930
    %962 = vmatprep.subr.bf16.mxu0 0
    %963 = vmatpush2.bf16.msra.mxu0 0
    %964 = vmatprep.subr.bf16.mxu0 0
    %965 = vmatpush2.bf16.msra.mxu0 0
    %966 = vmatprep.subr.bf16.mxu0 0
    %967 = vmatpush2.bf16.msra.mxu0 0
    %968 = vmatprep.subr.bf16.mxu0 0
    %969 = vmatpush2.bf16.msra.mxu0 0
    %970 = vmatprep.subr.bf16.mxu0 0
    %971 = vmatpush2.bf16.msra.mxu0 0
    %972 = vmatprep.subr.bf16.mxu0 0
    %973 = vmatpush2.bf16.msra.mxu0 0
    %974 = vmatprep.subr.bf16.mxu0 0
    %975 = vmatpush2.bf16.msra.mxu0 0
    %976 = vmatprep.subr.bf16.mxu0 0
    %977 = vmatpush2.bf16.msra.mxu0 0
    %978 = vmatprep.mubr.bf16.mxu0 0
    %979 = vmatmul.mubr.bf16.gmra.mxu0 %v874
    %v980 = vpop.f32.mrf.mxu0
    %v981 = vadd.f32 %v896, %v980
    %v982 = vpop.f32.mrf.mxu0
    %v983 = vpop.f32.mrf.mxu0
    %v984 = vpop.f32.mrf.mxu0
    %985 = vdwg.mxu0
    %986 = vst [vmem:[#allocation13] sm:$0xff] %v981
    // Predicated region
    $region62: #{tpu_custom_call.1} parent=1 // pred_check
      _
    $region63: #{tpu_custom_call.1} parent=1 // pred_check_branch
      %988 = sbr.rel (0) target = $region65
    $region64: #{tpu_custom_call.1} parent=1 // pred_region
      %s990 = ssub.s32 128, 128
      %991 = vsyncadd [#allocation4], %s990
      %s993 = sshll.u32 [#allocation13], 4
      %s994 = int_to_ptr.vmem [resolvable:$true] %s993
      %996 = dma.vmem_to_hbm [thread:$0]  %s994, 128, %s9, [#allocation4]
    $region65: #{tpu_custom_call.1} parent=1 // pred_fallthru
      _
    // Predicated region
    $region66: #{tpu_custom_call.1} parent=1 // pred_check
      _
    $region67: #{tpu_custom_call.1} parent=1 // pred_check_branch
      %998 = sbr.rel (0) target = $region69
    $region68: #{tpu_custom_call.1} parent=1 // pred_region
      %999 = dma.done [#allocation4], 128
    $region69: #{tpu_custom_call.1} parent=1 // pred_fallthru
      _
    %1000 = vsyncpa [#allocation3], 1
    %1001 = vsyncpa [#allocation6], 1
    %1002 = vsyncpa [#allocation9], 1
    %1003 = vsyncpa [#allocation12], 1
    %1004 = vsyncpa [#allocation4], 1

</llo_original>
